<compile_context>
chip_gen: v7x
topology: tpu7x:2x2x1
jax: 0.10.0
libtpu: 0.0.40
codegen_flags: <defaults>
</compile_context>

<pallas_src>
import functools

import jax
import jax.numpy as jnp
import numpy as np
from jax.experimental import pallas as pl
from jax.experimental.pallas import tpu as pltpu

# 8-neighborhood offsets (dy, dx) matching the LocalAffinity conv kernels:
# kernel n has its single 1 at (i, j); output = x[y + (i-1)*d, x + (j-1)*d]
# with replicate (clamped) boundary handling.  Order matches the reference.
_NEIGHBOR_OFFSETS = (
    (-1, -1), (-1, 0), (-1, 1),
    (0, -1),           (0, 1),
    (1, -1),  (1, 0),  (1, 1),
)


def _fbf_kernel(x_ref, o_ref, *, num_iter, dilations, H, W):
    C, HW = x_ref.shape          # HW == H * W (lane-dense minor dim)

    # ---- hoisted once per kernel invocation --------------------------------
    # Flat pixel index along the lane axis and the 4 unit-shift clamp masks.
    pix = jax.lax.broadcasted_iota(jnp.int32, (1, HW), 1)
    col = pix % W
    row_dn_ok = pix < (H - 1) * W        # i < H-1 : take x[i+1, j]
    row_up_ok = pix >= W                 # i > 0   : take x[i-1, j]
    col_rt_ok = col < (W - 1)            # j < W-1 : take x[i, j+1]
    col_lt_ok = col >= 1                 # j > 0   : take x[i, j-1]

    def unit_shift(x, ok_mask, flat_s):
        # Clamped unit shift: at clamped positions the replicate-padded
        # neighbor equals the pixel itself, so one roll + one select against a
        # precomputed static mask is exact (no edge broadcasts needed).
        rolled = pltpu.roll(x, (-flat_s) % HW, axis=1)
        return jnp.where(ok_mask, rolled, x)

    def shift_rows(x, r):
        # out[i, j] = x[clamp(i + r, 0, H-1), j]; composed from unit shifts.
        if r == 0:
            return x
        mask, s = (row_dn_ok, W) if r > 0 else (row_up_ok, -W)
        for _ in range(abs(r)):
            x = unit_shift(x, mask, s)
        return x

    def shift_cols(x, c):
        # out[i, j] = x[i, clamp(j + c, 0, W-1)]; composed from unit shifts.
        if c == 0:
            return x
        mask, s = (col_rt_ok, 1) if c > 0 else (col_lt_ok, -1)
        for _ in range(abs(c)):
            x = unit_shift(x, mask, s)
        return x

    inv_c = jnp.float32(1.0 / C)
    feat0 = x_ref[...].astype(jnp.float32)

    def one_iter(_, feat):
        num = None
        denom = None
        for d in dilations:
            # Only one row-shifted slab is live at a time (review item).
            for di in (-1, 0, 1):
                r = feat if di == 0 else shift_rows(feat, di * d)
                col_offs = (-d, d) if di == 0 else (-d, 0, d)
                for dc in col_offs:
                    fk = shift_cols(r, dc)
                    # aff_k = exp(-mean_C |feat - f_k|), shape (1, HW).
                    mk = jnp.sum(jnp.abs(feat - fk), axis=0,
                                 keepdims=True) * inv_c
                    ak = jnp.exp(-mk)
                    contrib = fk * ak            # broadcasts over C
                    num = contrib if num is None else num + contrib
                    denom = ak if denom is None else denom + ak
        # One exact reciprocal on the (1, HW) plane, then cheap multiplies.
        return num * pl.reciprocal(denom)

    feat = jax.lax.fori_loop(0, num_iter, one_iter, feat0)
    o_ref[...] = feat.astype(o_ref.dtype)


def fbf_forward(feature, num_iter=5, dilations=(1,)):
    """Pallas TPU implementation of FBFModule.forward. feature: (N, C, H, W)."""
    N, C, H, W = feature.shape
    HW = H * W
    # Lane-dense re-layout: flatten (H, W) into the lane axis (free reshape on
    # row-major HBM data).  Block covers the full (C, HW) slab per batch, so
    # the (8, 128) divisibility constraint is always satisfied.
    x = feature.reshape(N, C, HW)
    kernel = functools.partial(
        _fbf_kernel, num_iter=num_iter, dilations=tuple(dilations), H=H, W=W)
    out = pl.pallas_call(
        kernel,
        out_shape=jax.ShapeDtypeStruct((N, C, HW), feature.dtype),
        grid=(N,),
        in_specs=[pl.BlockSpec((None, C, HW), lambda n: (n, 0, 0))],
        out_specs=pl.BlockSpec((None, C, HW), lambda n: (n, 0, 0)),
        compiler_params=pltpu.CompilerParams(
            dimension_semantics=("parallel",),
            vmem_limit_bytes=32 * 1024 * 1024),
    )(x)
    return out.reshape(N, C, H, W)


def fbf_reference(feature, num_iter=5, dilations=(1,)):
    """Pure-JAX reference mirroring the PyTorch FBFModule semantics."""
    def clamp_shift(x, s, axis):
        L = x.shape[axis]
        idx = jnp.clip(jnp.arange(L) + s, 0, L - 1)
        return jnp.take(x, idx, axis=axis)

    feat = feature.astype(jnp.float32)
    for _ in range(num_iter):
        fs, affs = [], []
        for d in dilations:
            for (di, dj) in _NEIGHBOR_OFFSETS:
                fk = clamp_shift(clamp_shift(feat, di * d, 2), dj * d, 3)
                ak = jnp.exp(-jnp.mean(jnp.abs(feat - fk), axis=1,
                                       keepdims=True))
                fs.append(fk)
                affs.append(ak)
        denom = sum(affs)
        feat = sum(f * a for f, a in zip(fs, affs)) / denom
    return feat.astype(feature.dtype)


if __name__ == "__main__":
    # Small shapes consistent with FBFModule's forward: (N, C, H, W)
    N, C, H, W = 2, 4, 16, 16
    key = jax.random.PRNGKey(0)
    feature = jax.random.normal(key, (N, C, H, W), dtype=jnp.float32)

    out = fbf_forward(feature, num_iter=5, dilations=(1,))
    out = jax.block_until_ready(out)

    ref = fbf_reference(feature, num_iter=5, dilations=(1,))
    np.testing.assert_allclose(np.asarray(out), np.asarray(ref),
                               rtol=1e-5, atol=1e-5)
    print("KERNEL_OK")
</pallas_src>

<mosaic_0001>
module attributes {stable_mosaic.version = 11 : i64} {
  func.func @_fbf_kernel(%arg0: i32, %arg1: memref<1x4x256xf32, #tpu.memory_space<vmem>>, %arg2: memref<1x4x256xf32, #tpu.memory_space<vmem>>) attributes {dimension_semantics = [#tpu.dimension_semantics<parallel>], iteration_bounds = array<i64: 2>, scalar_prefetch = 0 : i64, scratch_operands = 0 : i64, tpu.core_type = #tpu.core_type<tc>, window_params = [{transform_indices = @transform_0, window_bounds = array<i64: 1, 4, 256>}, {transform_indices = @transform_1, window_bounds = array<i64: 1, 4, 256>}]} {
    %0 = tpu.iota {dimensions = array<i32: 1>} : vector<1x256xi32>
    %c16_i32 = arith.constant 16 : i32
    %c0_i32 = arith.constant 0 : i32
    %1 = arith.cmpi eq, %c16_i32, %c0_i32 : i32
    %c1_i32 = arith.constant 1 : i32
    %2 = arith.select %1, %c1_i32, %c16_i32 : i32
    %3 = vector.broadcast %2 : i32 to vector<1x256xi32>
    %4 = arith.remsi %0, %3 : vector<1x256xi32>
    %c0_i32_0 = arith.constant 0 : i32
    %5 = vector.broadcast %c0_i32_0 : i32 to vector<1x256xi32>
    %6 = arith.cmpi ne, %4, %5 : vector<1x256xi32>
    %c0_i32_1 = arith.constant 0 : i32
    %7 = vector.broadcast %c0_i32_1 : i32 to vector<1x256xi32>
    %8 = arith.cmpi slt, %4, %7 : vector<1x256xi32>
    %c0_i32_2 = arith.constant 0 : i32
    %9 = arith.cmpi slt, %2, %c0_i32_2 : i32
    %10 = vector.broadcast %9 : i1 to vector<1x256xi1>
    %11 = vector.broadcast %10 : vector<1x256xi1> to vector<1x256xi1>
    %12 = arith.xori %8, %11 : vector<1x256xi1>
    %13 = arith.andi %12, %6 : vector<1x256xi1>
    %14 = vector.broadcast %2 : i32 to vector<1x256xi32>
    %15 = arith.addi %4, %14 : vector<1x256xi32>
    %16 = arith.select %13, %15, %4 : vector<1x256xi1>, vector<1x256xi32>
    %c240_i32 = arith.constant 240 : i32
    %17 = vector.broadcast %c240_i32 : i32 to vector<1x256xi32>
    %18 = arith.cmpi slt, %0, %17 : vector<1x256xi32>
    %c16_i32_3 = arith.constant 16 : i32
    %19 = vector.broadcast %c16_i32_3 : i32 to vector<1x256xi32>
    %20 = arith.cmpi sge, %0, %19 : vector<1x256xi32>
    %c15_i32 = arith.constant 15 : i32
    %21 = vector.broadcast %c15_i32 : i32 to vector<1x256xi32>
    %22 = arith.cmpi slt, %16, %21 : vector<1x256xi32>
    %c1_i32_4 = arith.constant 1 : i32
    %23 = vector.broadcast %c1_i32_4 : i32 to vector<1x256xi32>
    %24 = arith.cmpi sge, %16, %23 : vector<1x256xi32>
    %c0 = arith.constant 0 : index
    %c0_5 = arith.constant 0 : index
    %c0_6 = arith.constant 0 : index
    %25 = vector.load %arg1[%c0, %c0_5, %c0_6] : memref<1x4x256xf32, #tpu.memory_space<vmem>>, vector<1x4x256xf32>
    %26 = vector.shape_cast %25 : vector<1x4x256xf32> to vector<4x256xf32>
    %cst = arith.constant 2.500000e-01 : f32
    %c0_i32_7 = arith.constant 0 : i32
    %c5_i32 = arith.constant 5 : i32
    %27 = arith.addi %c0_i32_7, %c5_i32 : i32
    %c1_i32_8 = arith.constant 1 : i32
    %28 = scf.for %arg3 = %c0_i32_7 to %27 step %c1_i32_8 iter_args(%arg4 = %26) -> (vector<4x256xf32>)  : i32 {
      %c16_i32_12 = arith.constant 16 : i32
      %32 = tpu.dynamic_rotate %arg4 by %c16_i32_12 dim 1 : vector<4x256xf32>, i32 -> vector<4x256xf32>
      %33 = vector.shape_cast %20 : vector<1x256xi1> to vector<1x256xi1>
      %34 = vector.broadcast %33 : vector<1x256xi1> to vector<4x256xi1>
      %35 = arith.select %34, %32, %arg4 : vector<4x256xi1>, vector<4x256xf32>
      %c1_i32_13 = arith.constant 1 : i32
      %36 = tpu.dynamic_rotate %35 by %c1_i32_13 dim 1 : vector<4x256xf32>, i32 -> vector<4x256xf32>
      %37 = vector.shape_cast %24 : vector<1x256xi1> to vector<1x256xi1>
      %38 = vector.broadcast %37 : vector<1x256xi1> to vector<4x256xi1>
      %39 = arith.select %38, %36, %35 : vector<4x256xi1>, vector<4x256xf32>
      %40 = arith.subf %arg4, %39 : vector<4x256xf32>
      %41 = math.absf %40 : vector<4x256xf32>
      %cst_14 = arith.constant dense<0.000000e+00> : vector<256xf32>
      %42 = vector.multi_reduction <add>, %41, %cst_14 [0] : vector<4x256xf32> to vector<256xf32>
      %43 = vector.shape_cast %42 : vector<256xf32> to vector<1x256xf32>
      %44 = vector.broadcast %cst : f32 to vector<1x256xf32>
      %45 = arith.mulf %43, %44 : vector<1x256xf32>
      %cst_15 = arith.constant 0.000000e+00 : f32
      %46 = vector.broadcast %cst_15 : f32 to vector<1x256xf32>
      %47 = arith.subf %46, %45 : vector<1x256xf32>
      %48 = math.exp %47 : vector<1x256xf32>
      %49 = vector.broadcast %48 : vector<1x256xf32> to vector<4x256xf32>
      %50 = arith.mulf %39, %49 : vector<4x256xf32>
      %51 = arith.subf %arg4, %35 : vector<4x256xf32>
      %52 = math.absf %51 : vector<4x256xf32>
      %cst_16 = arith.constant dense<0.000000e+00> : vector<256xf32>
      %53 = vector.multi_reduction <add>, %52, %cst_16 [0] : vector<4x256xf32> to vector<256xf32>
      %54 = vector.shape_cast %53 : vector<256xf32> to vector<1x256xf32>
      %55 = vector.broadcast %cst : f32 to vector<1x256xf32>
      %56 = arith.mulf %54, %55 : vector<1x256xf32>
      %cst_17 = arith.constant 0.000000e+00 : f32
      %57 = vector.broadcast %cst_17 : f32 to vector<1x256xf32>
      %58 = arith.subf %57, %56 : vector<1x256xf32>
      %59 = math.exp %58 : vector<1x256xf32>
      %60 = vector.broadcast %59 : vector<1x256xf32> to vector<4x256xf32>
      %61 = arith.mulf %35, %60 : vector<4x256xf32>
      %62 = arith.addf %50, %61 : vector<4x256xf32>
      %63 = arith.addf %48, %59 : vector<1x256xf32>
      %c255_i32 = arith.constant 255 : i32
      %64 = tpu.dynamic_rotate %35 by %c255_i32 dim 1 : vector<4x256xf32>, i32 -> vector<4x256xf32>
      %65 = vector.shape_cast %22 : vector<1x256xi1> to vector<1x256xi1>
      %66 = vector.broadcast %65 : vector<1x256xi1> to vector<4x256xi1>
      %67 = arith.select %66, %64, %35 : vector<4x256xi1>, vector<4x256xf32>
      %68 = arith.subf %arg4, %67 : vector<4x256xf32>
      %69 = math.absf %68 : vector<4x256xf32>
      %cst_18 = arith.constant dense<0.000000e+00> : vector<256xf32>
      %70 = vector.multi_reduction <add>, %69, %cst_18 [0] : vector<4x256xf32> to vector<256xf32>
      %71 = vector.shape_cast %70 : vector<256xf32> to vector<1x256xf32>
      %72 = vector.broadcast %cst : f32 to vector<1x256xf32>
      %73 = arith.mulf %71, %72 : vector<1x256xf32>
      %cst_19 = arith.constant 0.000000e+00 : f32
      %74 = vector.broadcast %cst_19 : f32 to vector<1x256xf32>
      %75 = arith.subf %74, %73 : vector<1x256xf32>
      %76 = math.exp %75 : vector<1x256xf32>
      %77 = vector.broadcast %76 : vector<1x256xf32> to vector<4x256xf32>
      %78 = arith.mulf %67, %77 : vector<4x256xf32>
      %79 = arith.addf %62, %78 : vector<4x256xf32>
      %80 = arith.addf %63, %76 : vector<1x256xf32>
      %c1_i32_20 = arith.constant 1 : i32
      %81 = tpu.dynamic_rotate %arg4 by %c1_i32_20 dim 1 : vector<4x256xf32>, i32 -> vector<4x256xf32>
      %82 = vector.shape_cast %24 : vector<1x256xi1> to vector<1x256xi1>
      %83 = vector.broadcast %82 : vector<1x256xi1> to vector<4x256xi1>
      %84 = arith.select %83, %81, %arg4 : vector<4x256xi1>, vector<4x256xf32>
      %85 = arith.subf %arg4, %84 : vector<4x256xf32>
      %86 = math.absf %85 : vector<4x256xf32>
      %cst_21 = arith.constant dense<0.000000e+00> : vector<256xf32>
      %87 = vector.multi_reduction <add>, %86, %cst_21 [0] : vector<4x256xf32> to vector<256xf32>
      %88 = vector.shape_cast %87 : vector<256xf32> to vector<1x256xf32>
      %89 = vector.broadcast %cst : f32 to vector<1x256xf32>
      %90 = arith.mulf %88, %89 : vector<1x256xf32>
      %cst_22 = arith.constant 0.000000e+00 : f32
      %91 = vector.broadcast %cst_22 : f32 to vector<1x256xf32>
      %92 = arith.subf %91, %90 : vector<1x256xf32>
      %93 = math.exp %92 : vector<1x256xf32>
      %94 = vector.broadcast %93 : vector<1x256xf32> to vector<4x256xf32>
      %95 = arith.mulf %84, %94 : vector<4x256xf32>
      %96 = arith.addf %79, %95 : vector<4x256xf32>
      %97 = arith.addf %80, %93 : vector<1x256xf32>
      %c255_i32_23 = arith.constant 255 : i32
      %98 = tpu.dynamic_rotate %arg4 by %c255_i32_23 dim 1 : vector<4x256xf32>, i32 -> vector<4x256xf32>
      %99 = vector.shape_cast %22 : vector<1x256xi1> to vector<1x256xi1>
      %100 = vector.broadcast %99 : vector<1x256xi1> to vector<4x256xi1>
      %101 = arith.select %100, %98, %arg4 : vector<4x256xi1>, vector<4x256xf32>
      %102 = arith.subf %arg4, %101 : vector<4x256xf32>
      %103 = math.absf %102 : vector<4x256xf32>
      %cst_24 = arith.constant dense<0.000000e+00> : vector<256xf32>
      %104 = vector.multi_reduction <add>, %103, %cst_24 [0] : vector<4x256xf32> to vector<256xf32>
      %105 = vector.shape_cast %104 : vector<256xf32> to vector<1x256xf32>
      %106 = vector.broadcast %cst : f32 to vector<1x256xf32>
      %107 = arith.mulf %105, %106 : vector<1x256xf32>
      %cst_25 = arith.constant 0.000000e+00 : f32
      %108 = vector.broadcast %cst_25 : f32 to vector<1x256xf32>
      %109 = arith.subf %108, %107 : vector<1x256xf32>
      %110 = math.exp %109 : vector<1x256xf32>
      %111 = vector.broadcast %110 : vector<1x256xf32> to vector<4x256xf32>
      %112 = arith.mulf %101, %111 : vector<4x256xf32>
      %113 = arith.addf %96, %112 : vector<4x256xf32>
      %114 = arith.addf %97, %110 : vector<1x256xf32>
      %c240_i32_26 = arith.constant 240 : i32
      %115 = tpu.dynamic_rotate %arg4 by %c240_i32_26 dim 1 : vector<4x256xf32>, i32 -> vector<4x256xf32>
      %116 = vector.shape_cast %18 : vector<1x256xi1> to vector<1x256xi1>
      %117 = vector.broadcast %116 : vector<1x256xi1> to vector<4x256xi1>
      %118 = arith.select %117, %115, %arg4 : vector<4x256xi1>, vector<4x256xf32>
      %c1_i32_27 = arith.constant 1 : i32
      %119 = tpu.dynamic_rotate %118 by %c1_i32_27 dim 1 : vector<4x256xf32>, i32 -> vector<4x256xf32>
      %120 = vector.shape_cast %24 : vector<1x256xi1> to vector<1x256xi1>
      %121 = vector.broadcast %120 : vector<1x256xi1> to vector<4x256xi1>
      %122 = arith.select %121, %119, %118 : vector<4x256xi1>, vector<4x256xf32>
      %123 = arith.subf %arg4, %122 : vector<4x256xf32>
      %124 = math.absf %123 : vector<4x256xf32>
      %cst_28 = arith.constant dense<0.000000e+00> : vector<256xf32>
      %125 = vector.multi_reduction <add>, %124, %cst_28 [0] : vector<4x256xf32> to vector<256xf32>
      %126 = vector.shape_cast %125 : vector<256xf32> to vector<1x256xf32>
      %127 = vector.broadcast %cst : f32 to vector<1x256xf32>
      %128 = arith.mulf %126, %127 : vector<1x256xf32>
      %cst_29 = arith.constant 0.000000e+00 : f32
      %129 = vector.broadcast %cst_29 : f32 to vector<1x256xf32>
      %130 = arith.subf %129, %128 : vector<1x256xf32>
      %131 = math.exp %130 : vector<1x256xf32>
      %132 = vector.broadcast %131 : vector<1x256xf32> to vector<4x256xf32>
      %133 = arith.mulf %122, %132 : vector<4x256xf32>
      %134 = arith.addf %113, %133 : vector<4x256xf32>
      %135 = arith.addf %114, %131 : vector<1x256xf32>
      %136 = arith.subf %arg4, %118 : vector<4x256xf32>
      %137 = math.absf %136 : vector<4x256xf32>
      %cst_30 = arith.constant dense<0.000000e+00> : vector<256xf32>
      %138 = vector.multi_reduction <add>, %137, %cst_30 [0] : vector<4x256xf32> to vector<256xf32>
      %139 = vector.shape_cast %138 : vector<256xf32> to vector<1x256xf32>
      %140 = vector.broadcast %cst : f32 to vector<1x256xf32>
      %141 = arith.mulf %139, %140 : vector<1x256xf32>
      %cst_31 = arith.constant 0.000000e+00 : f32
      %142 = vector.broadcast %cst_31 : f32 to vector<1x256xf32>
      %143 = arith.subf %142, %141 : vector<1x256xf32>
      %144 = math.exp %143 : vector<1x256xf32>
      %145 = vector.broadcast %144 : vector<1x256xf32> to vector<4x256xf32>
      %146 = arith.mulf %118, %145 : vector<4x256xf32>
      %147 = arith.addf %134, %146 : vector<4x256xf32>
      %148 = arith.addf %135, %144 : vector<1x256xf32>
      %c255_i32_32 = arith.constant 255 : i32
      %149 = tpu.dynamic_rotate %118 by %c255_i32_32 dim 1 : vector<4x256xf32>, i32 -> vector<4x256xf32>
      %150 = vector.shape_cast %22 : vector<1x256xi1> to vector<1x256xi1>
      %151 = vector.broadcast %150 : vector<1x256xi1> to vector<4x256xi1>
      %152 = arith.select %151, %149, %118 : vector<4x256xi1>, vector<4x256xf32>
      %153 = arith.subf %arg4, %152 : vector<4x256xf32>
      %154 = math.absf %153 : vector<4x256xf32>
      %cst_33 = arith.constant dense<0.000000e+00> : vector<256xf32>
      %155 = vector.multi_reduction <add>, %154, %cst_33 [0] : vector<4x256xf32> to vector<256xf32>
      %156 = vector.shape_cast %155 : vector<256xf32> to vector<1x256xf32>
      %157 = vector.broadcast %cst : f32 to vector<1x256xf32>
      %158 = arith.mulf %156, %157 : vector<1x256xf32>
      %cst_34 = arith.constant 0.000000e+00 : f32
      %159 = vector.broadcast %cst_34 : f32 to vector<1x256xf32>
      %160 = arith.subf %159, %158 : vector<1x256xf32>
      %161 = math.exp %160 : vector<1x256xf32>
      %162 = vector.broadcast %161 : vector<1x256xf32> to vector<4x256xf32>
      %163 = arith.mulf %152, %162 : vector<4x256xf32>
      %164 = arith.addf %147, %163 : vector<4x256xf32>
      %165 = arith.addf %148, %161 : vector<1x256xf32>
      %166 = tpu.reciprocal %165 : vector<1x256xf32> -> vector<1x256xf32>
      %167 = vector.broadcast %166 : vector<1x256xf32> to vector<4x256xf32>
      %168 = arith.mulf %164, %167 : vector<4x256xf32>
      scf.yield %168 : vector<4x256xf32>
    }
    %c0_9 = arith.constant 0 : index
    %c0_10 = arith.constant 0 : index
    %c0_11 = arith.constant 0 : index
    %29 = vector.load %arg2[%c0_9, %c0_10, %c0_11] : memref<1x4x256xf32, #tpu.memory_space<vmem>>, vector<1x4x256xf32>
    %30 = vector.shape_cast %29 : vector<1x4x256xf32> to vector<4x256xf32>
    %31 = vector.shape_cast %28 : vector<4x256xf32> to vector<1x4x256xf32>
    tpu.vector_store %arg2[%c0_9, %c0_10, %c0_11], %31 {strides = array<i32>} : memref<1x4x256xf32, #tpu.memory_space<vmem>>, vector<1x4x256xf32>,
    return
  }
  func.func @transform_0(%arg0: i32) -> (i32, i32, i32) {
    %c0_i32 = arith.constant 0 : i32
    %c0_i32_0 = arith.constant 0 : i32
    %c0_i32_1 = arith.constant 0 : i32
    return %arg0, %c0_i32, %c0_i32_0 : i32, i32, i32
  }
  func.func @transform_1(%arg0: i32) -> (i32, i32, i32) {
    %c0_i32 = arith.constant 0 : i32
    %c0_i32_0 = arith.constant 0 : i32
    %c0_i32_1 = arith.constant 0 : i32
    return %arg0, %c0_i32, %c0_i32_0 : i32, i32, i32
  }
}

</mosaic_0001>

<llo_original>
// kernel: tpu_custom_call.1
$region0: #{tpu_custom_call.1}
  #allocation0 [shape = 'u32[]', space=smem, size = 0x4, offset = 0x4, fixed_abs, tag = 'smem constant byte address 0x4 - core index']
  #allocation1 [shape = 'u32[144,128]{1,0:T(1,128)}', space=vmem, size = 0x12000, scoped, tag = 'internal scratch']
  %s0 = inlined_call_operand.hbm [shape: f32[2,4,256], index: 0, kind: input, shape index: {}]
  %s1 = inlined_call_operand.hbm [shape: f32[2,4,256], index: 1, kind: output, shape index: {}]
  %s2 = sld [smem:[#allocation0]]
  $region48: #{tpu_custom_call.1} parent=0
    _
  %s4 = ssub.s32 1, %s2
  %s5 = scalar_select 0, %s4, %s2
  $region1: #{tpu_custom_call.1} parent=0
    #allocation2 [shape = 'u8[8192]{0}', space=vmem, size = 0x2000, scoped, tag = 'input window, operand 0']
    #allocation3 [shape = 's32[2]{0}', space=sflag, size = 0x8, scoped, tag = 'scoped memory for tpu_custom_call.1']
    #allocation4 [shape = 's32[2]{0}', space=sflag, size = 0x8, scoped, tag = 'scoped memory for tpu_custom_call.1']
    #allocation5 [shape = 'u8[8192]{0}', space=vmem, size = 0x2000, scoped, tag = 'output window, operand 0']
    %6 = vsyncpa [#allocation3], 0
    %s7 = scalar_lea.sflag [#allocation3], 1
    %8 = vsyncpa %s7, 0
    %9 = vsyncpa [#allocation4], 0
    %s10 = scalar_lea.sflag [#allocation4], 1
    %11 = vsyncpa %s10, 0
    loop: start=0, step=1, limit=4
    $region2: #{tpu_custom_call.1} parent=1 // loop_pre_header
      _
    $region3: #{tpu_custom_call.1} parent=1 // loop_header
      %s13 = sphi 0, %s17
      %p14 = scmp.ge.s32.totalorder %s13, 4
      %s23 = sphi 0, %s25
      %s26 = sphi 0, %s23
      %s27 = sphi 0, %s26
      %s43 = sphi 0, %s27
      %s49 = sphi 0, %s51
      %s52 = sphi 0, %s49
      %s53 = sphi 0, %s52
      %s69 = sphi 0, %s53
    $region4: #{tpu_custom_call.1} parent=1 // loop_header_branch
      %16 = sbr.rel (%p14) target = $region8
    $region5: #{tpu_custom_call.1} parent=1 // loop_body
      %s18 = ssub.s32 %s13, 1
      %s19 = ssub.s32 %s13, 2
      %s20 = sadd.s32 %s13, 1
      %s21 = ssub.s32 %s13, %s20
      %p22 = scmp.eq.s32.totalorder %s21, 0
      %s24 = sadd.s32 %s23, 1
      %s25 = scalar_select %p22, %s23, %s24
      %p28 = pneg %p22
      %p29 = scmp.eq.s32.totalorder %s13, 1
      %p30 = por %p28, %p29
      %p31 = scmp.ne.s32.totalorder %s23, %s26
      %p32 = scmp.eq.s32.totalorder %s13, 0
      %p33 = por %p31, %p32
      %p34 = scmp.ne.s32.totalorder %s23, %s26
      %p35 = scmp.eq.s32.totalorder %s18, 1
      %p36 = por %p34, %p35
      %p37 = scmp.ne.s32.totalorder %s26, %s27
      %p38 = scmp.eq.s32.totalorder %s18, 0
      %p39 = por %p37, %p38
      %p40 = scmp.ne.s32.totalorder %s26, %s27
      %p41 = scmp.eq.s32.totalorder %s19, 1
      %p42 = por %p40, %p41
      %p44 = scmp.ne.s32.totalorder %s27, %s43
      %p45 = scmp.eq.s32.totalorder %s19, 0
      %p46 = por %p44, %p45
      %s47 = ssub.s32 %s13, %s20
      %p48 = scmp.eq.s32.totalorder %s47, 0
      %s50 = sadd.s32 %s49, 1
      %s51 = scalar_select %p48, %s49, %s50
      %p54 = pneg %p48
      %p55 = scmp.eq.s32.totalorder %s13, 1
      %p56 = por %p54, %p55
      %p57 = scmp.ne.s32.totalorder %s49, %s52
      %p58 = scmp.eq.s32.totalorder %s13, 0
      %p59 = por %p57, %p58
      %p60 = scmp.ne.s32.totalorder %s49, %s52
      %p61 = scmp.eq.s32.totalorder %s18, 1
      %p62 = por %p60, %p61
      %p63 = scmp.ne.s32.totalorder %s52, %s53
      %p64 = scmp.eq.s32.totalorder %s18, 0
      %p65 = por %p63, %p64
      %p66 = scmp.ne.s32.totalorder %s52, %s53
      %p67 = scmp.eq.s32.totalorder %s19, 1
      %p68 = por %p66, %p67
      %p70 = scmp.ne.s32.totalorder %s53, %s69
      %p71 = scmp.eq.s32.totalorder %s19, 0
      %p72 = por %p70, %p71
      %p73 = scmp.le.s32.totalorder 1, %s13
      %p74 = scmp.lt.s32.totalorder %s13, 3
      %p75 = pnand %p73, %p74
      %p76 = pneg %p75
      // Predicated region
      $region9: #{tpu_custom_call.1} parent=5 // pred_check
        _
      $region10: #{tpu_custom_call.1} parent=5 // pred_check_branch
        %78 = sbr.rel (%p75) target = $region12
      $region11: #{tpu_custom_call.1} parent=5 // pred_region
        %s79 = ssub.s32 %s13, 1
      $region12: #{tpu_custom_call.1} parent=5 // pred_fallthru
        _
      %p80 = scmp.lt.s32.totalorder %s13, 2
      // Predicated region
      $region13: #{tpu_custom_call.1} parent=5 // pred_check
        %p81 = pneg %p80
      $region14: #{tpu_custom_call.1} parent=5 // pred_check_branch
        %83 = sbr.rel (%p81) target = $region16
      $region15: #{tpu_custom_call.1} parent=5 // pred_region
        // Predicated region
        $region17: #{tpu_custom_call.1} parent=15 // pred_check
          %p84 = pneg %p33
        $region18: #{tpu_custom_call.1} parent=15 // pred_check_branch
          %86 = sbr.rel (%p84) target = $region20
        $region19: #{tpu_custom_call.1} parent=15 // pred_region
          %s87 = sand.u32 %s23, 1
          %s88 = scalar_lea.sflag [#allocation3], %s87
          %s89 = sand.u32 %s23, 1
          %s90 = smul.addr %s89, 8
          %s91 = scalar_lea.vmem [#allocation2], %s90
          %s93 = ssub.s32 128, 128
          %94 = vsyncadd %s88, %s93
          %s95 = smul.addr %s13, 2
          %s96 = smul.addr %s95, 64
          %s97 = scalar_lea.hbm %s0, %s96
          %s99 = sshll.u32 %s91, 4
          %s100 = int_to_ptr.vmem [resolvable:$true] %s99
          %102 = dma.hbm_to_vmem [thread:$0]  %s97, 128, %s100, %s88
        $region20: #{tpu_custom_call.1} parent=15 // pred_fallthru
          _
      $region16: #{tpu_custom_call.1} parent=5 // pred_fallthru
        _
      %p103 = scmp.le.s32.totalorder 1, %s13
      %p104 = scmp.lt.s32.totalorder %s13, 3
      %p105 = pnand %p103, %p104
      %p106 = pneg %p105
      // Predicated region
      $region21: #{tpu_custom_call.1} parent=5 // pred_check
        _
      $region22: #{tpu_custom_call.1} parent=5 // pred_check_branch
        %108 = sbr.rel (%p105) target = $region24
      $region23: #{tpu_custom_call.1} parent=5 // pred_region
        %s109 = ssub.s32 %s13, 1
        %s110 = sand.u32 %s26, 1
        %s111 = scalar_lea.sflag [#allocation3], %s110
        %s112 = sand.u32 %s26, 1
        %s113 = smul.addr %s112, 8
        %s114 = scalar_lea.vmem [#allocation2], %s113
        // Predicated region
        $region25: #{tpu_custom_call.1} parent=23 // pred_check
          %p115 = pneg %p39
        $region26: #{tpu_custom_call.1} parent=23 // pred_check_branch
          %117 = sbr.rel (%p115) target = $region28
        $region27: #{tpu_custom_call.1} parent=23 // pred_region
          %118 = dma.done %s111, 128
        $region28: #{tpu_custom_call.1} parent=23 // pred_fallthru
          _
        %s119 = sand.u32 %s26, 1
        %s120 = scalar_lea.sflag [#allocation3], %s119
        %s121 = sand.u32 %s26, 1
        %s122 = smul.addr %s121, 8
        %s123 = scalar_lea.vmem [#allocation2], %s122
        %p124 = pneg %p39
        %p125 = pneg %p36
        %p126 = pneg %p65
        %p127 = pneg %p62
        %s128 = sand.u32 %s52, 1
        %s129 = scalar_lea.sflag [#allocation4], %s128
        %s130 = sand.u32 %s52, 1
        %s131 = smul.addr %s130, 8
        %s132 = scalar_lea.vmem [#allocation5], %s131
        %v133 = vlaneseq
        %v134 = vand.u32 %v133, 127
        %v135 = vadd.s32 %v134, 128
        %vm136 = vcmp.lt.s32.totalorder %v134, 0
        %v137 = vsub.s32 0, %v134
        %v138 = vsel %vm136, %v137, %v134
        %v139 = vshrl.u32 %v138, 4
        %v140 = vand.u32 %v138, 15
        %v141 = vsub.s32 0, %v140
        %v142 = vsel %vm136, %v141, %v140
        %vm143 = vcmp.lt.s32.totalorder %v135, 0
        %v144 = vsub.s32 0, %v135
        %v145 = vsel %vm143, %v144, %v135
        %v146 = vshrl.u32 %v145, 4
        %v147 = vand.u32 %v145, 15
        %v148 = vsub.s32 0, %v147
        %v149 = vsel %vm143, %v148, %v147
        %vm150 = vcmp.ne.s32.totalorder %v142, 0
        %vm151 = vcmp.ne.s32.totalorder %v149, 0
        %vm152 = vcmp.lt.s32.totalorder %v142, 0
        %vm153 = vcmp.lt.s32.totalorder %v149, 0
        %vm154 = vmand %vm152, %vm150
        %vm155 = vmand %vm153, %vm151
        %v156 = vadd.s32 %v142, 16
        %v157 = vadd.s32 %v149, 16
        %v158 = vsel %vm154, %v156, %v142
        %v159 = vsel %vm155, %v157, %v149
        %vm160 = vcmp.lt.s32.totalorder %v134, 240
        %vm161 = vcmp.lt.s32.totalorder %v135, 240
        %vm162 = vcmp.ge.s32.totalorder %v134, 16
        %vm163 = vcmp.ge.s32.totalorder %v135, 16
        %vm164 = vcmp.lt.s32.totalorder %v158, 15
        %vm165 = vcmp.lt.s32.totalorder %v159, 15
        %vm166 = vcmp.ge.s32.totalorder %v158, 1
        %vm167 = vcmp.ge.s32.totalorder %v159, 1
        %v168 = vld [vmem:[%s114] sm:$0xff]
        %v170 = vcombine.high %v168, %v168
        loop: start=0, step=1, limit=5
        $region29: #{tpu_custom_call.1} parent=23 // loop_pre_header
          _
        $region30: #{tpu_custom_call.1} parent=23 // loop_header
          %s173 = sphi 0, %s177
          %p174 = scmp.ge.s32.totalorder %s173, 5
          %v178 = vphi %v168, %v519
          %v179 = vphi %v170, %v520
        $region31: #{tpu_custom_call.1} parent=23 // loop_header_branch
          %176 = sbr.rel (%p174) target = $region35
        $region32: #{tpu_custom_call.1} parent=23 // loop_body
          %180 = vrot.lane.b32.xlu0 %v178, 16
          %v181 = vpop.permute.xlu0 %180
          %182 = vrot.lane.b32.xlu0 %v179, 16
          %v183 = vpop.permute.xlu0 %182
          %vm184 = vcmp.lt.s32.totalorder %v134, 16
          %v185 = vsel %vm184, %v181, %v183
          %v186 = vsel %vm184, %v183, %v181
          %v187 = vsel %vm162, 1, 0
          %v188 = vsel %vm163, 1, 0
          %vm189 = vcmp.eq.s32.totalorder %v187, 1
          %vm190 = vcmp.eq.s32.totalorder %v188, 1
          %v191 = vsel %vm189, %v186, %v178
          %v192 = vsel %vm190, %v185, %v179
          %193 = vrot.lane.b32.xlu0 %v191, 1
          %v194 = vpop.permute.xlu0 %193
          %195 = vrot.lane.b32.xlu0 %v192, 1
          %v196 = vpop.permute.xlu0 %195
          %vm197 = vcmp.lt.s32.totalorder %v134, 1
          %v198 = vsel %vm197, %v194, %v196
          %v199 = vsel %vm197, %v196, %v194
          %v200 = vsel %vm166, 1, 0
          %v201 = vsel %vm167, 1, 0
          %vm202 = vcmp.eq.s32.totalorder %v200, 1
          %vm203 = vcmp.eq.s32.totalorder %v201, 1
          %v204 = vsel %vm202, %v199, %v191
          %v205 = vsel %vm203, %v198, %v192
          %v206 = vsub.f32 %v178, %v204
          %v207 = vsub.f32 %v179, %v205
          %v208 = vand.u32 2147483647, %v206
          %v209 = vand.u32 2147483647, %v207
          %vm210 = vcmask 1043456
          %v211 = vsel %vm210, %v208, 0.0
          %v212 = vrot.slane %v211, 4
          %v213 = vadd.f32 %v211, %v212
          %v214 = vrot.slane %v213, 2
          %v215 = vadd.f32 %v213, %v214
          %v216 = vrot.slane %v215, 1
          %v217 = vadd.f32 %v215, %v216
          %v218 = vsel %vm210, %v209, 0.0
          %v219 = vrot.slane %v218, 4
          %v220 = vadd.f32 %v218, %v219
          %v221 = vrot.slane %v220, 2
          %v222 = vadd.f32 %v220, %v221
          %v223 = vrot.slane %v222, 1
          %v224 = vadd.f32 %v222, %v223
          %v225 = vmul.f32 %v217, 0.25
          %v226 = vmul.f32 %v224, 0.25
          %v227 = vsub.f32 0.0, %v225
          %v228 = vsub.f32 0.0, %v226
          %v229 = vmul.f32 %v227, 1.442695
          %v230 = vpow.pop %v229
          %v231 = vmul.f32 %v228, 1.442695
          %v232 = vpow.pop %v231
          %v233 = vmul.f32 %v204, %v230
          %v234 = vmul.f32 %v205, %v232
          %v235 = vsub.f32 %v178, %v191
          %v236 = vsub.f32 %v179, %v192
          %v237 = vand.u32 2147483647, %v235
          %v238 = vand.u32 2147483647, %v236
          %v239 = vsel %vm210, %v237, 0.0
          %v240 = vrot.slane %v239, 4
          %v241 = vadd.f32 %v239, %v240
          %v242 = vrot.slane %v241, 2
          %v243 = vadd.f32 %v241, %v242
          %v244 = vrot.slane %v243, 1
          %v245 = vadd.f32 %v243, %v244
          %v246 = vsel %vm210, %v238, 0.0
          %v247 = vrot.slane %v246, 4
          %v248 = vadd.f32 %v246, %v247
          %v249 = vrot.slane %v248, 2
          %v250 = vadd.f32 %v248, %v249
          %v251 = vrot.slane %v250, 1
          %v252 = vadd.f32 %v250, %v251
          %v253 = vmul.f32 %v245, 0.25
          %v254 = vmul.f32 %v252, 0.25
          %v255 = vsub.f32 0.0, %v253
          %v256 = vsub.f32 0.0, %v254
          %v257 = vmul.f32 %v255, 1.442695
          %v258 = vpow.pop %v257
          %v259 = vmul.f32 %v256, 1.442695
          %v260 = vpow.pop %v259
          %v261 = vmul.f32 %v191, %v258
          %v262 = vmul.f32 %v192, %v260
          %v263 = vadd.f32 %v233, %v261
          %v264 = vadd.f32 %v234, %v262
          %v265 = vadd.f32 %v230, %v258
          %v266 = vadd.f32 %v232, %v260
          %267 = vrot.lane.b32.xlu0 %v191, 127
          %v268 = vpop.permute.xlu0 %267
          %269 = vrot.lane.b32.xlu0 %v192, 127
          %v270 = vpop.permute.xlu0 %269
          %vm271 = vcmp.lt.s32.totalorder %v134, 127
          %v272 = vsel %vm271, %v268, %v270
          %v273 = vsel %vm271, %v270, %v268
          %v274 = vsel %vm164, 1, 0
          %v275 = vsel %vm165, 1, 0
          %vm276 = vcmp.eq.s32.totalorder %v274, 1
          %vm277 = vcmp.eq.s32.totalorder %v275, 1
          %v278 = vsel %vm276, %v272, %v191
          %v279 = vsel %vm277, %v273, %v192
          %v280 = vsub.f32 %v178, %v278
          %v281 = vsub.f32 %v179, %v279
          %v282 = vand.u32 2147483647, %v280
          %v283 = vand.u32 2147483647, %v281
          %v284 = vsel %vm210, %v282, 0.0
          %v285 = vrot.slane %v284, 4
          %v286 = vadd.f32 %v284, %v285
          %v287 = vrot.slane %v286, 2
          %v288 = vadd.f32 %v286, %v287
          %v289 = vrot.slane %v288, 1
          %v290 = vadd.f32 %v288, %v289
          %v291 = vsel %vm210, %v283, 0.0
          %v292 = vrot.slane %v291, 4
          %v293 = vadd.f32 %v291, %v292
          %v294 = vrot.slane %v293, 2
          %v295 = vadd.f32 %v293, %v294
          %v296 = vrot.slane %v295, 1
          %v297 = vadd.f32 %v295, %v296
          %v298 = vmul.f32 %v290, 0.25
          %v299 = vmul.f32 %v297, 0.25
          %v300 = vsub.f32 0.0, %v298
          %v301 = vsub.f32 0.0, %v299
          %v302 = vmul.f32 %v300, 1.442695
          %v303 = vpow.pop %v302
          %v304 = vmul.f32 %v301, 1.442695
          %v305 = vpow.pop %v304
          %v306 = vmul.f32 %v278, %v303
          %v307 = vmul.f32 %v279, %v305
          %v308 = vadd.f32 %v263, %v306
          %v309 = vadd.f32 %v264, %v307
          %v310 = vadd.f32 %v265, %v303
          %v311 = vadd.f32 %v266, %v305
          %312 = vrot.lane.b32.xlu0 %v178, 1
          %v313 = vpop.permute.xlu0 %312
          %314 = vrot.lane.b32.xlu0 %v179, 1
          %v315 = vpop.permute.xlu0 %314
          %v316 = vsel %vm197, %v313, %v315
          %v317 = vsel %vm197, %v315, %v313
          %v318 = vsel %vm202, %v317, %v178
          %v319 = vsel %vm203, %v316, %v179
          %v320 = vsub.f32 %v178, %v318
          %v321 = vsub.f32 %v179, %v319
          %v322 = vand.u32 2147483647, %v320
          %v323 = vand.u32 2147483647, %v321
          %v324 = vsel %vm210, %v322, 0.0
          %v325 = vrot.slane %v324, 4
          %v326 = vadd.f32 %v324, %v325
          %v327 = vrot.slane %v326, 2
          %v328 = vadd.f32 %v326, %v327
          %v329 = vrot.slane %v328, 1
          %v330 = vadd.f32 %v328, %v329
          %v331 = vsel %vm210, %v323, 0.0
          %v332 = vrot.slane %v331, 4
          %v333 = vadd.f32 %v331, %v332
          %v334 = vrot.slane %v333, 2
          %v335 = vadd.f32 %v333, %v334
          %v336 = vrot.slane %v335, 1
          %v337 = vadd.f32 %v335, %v336
          %v338 = vmul.f32 %v330, 0.25
          %v339 = vmul.f32 %v337, 0.25
          %v340 = vsub.f32 0.0, %v338
          %v341 = vsub.f32 0.0, %v339
          %v342 = vmul.f32 %v340, 1.442695
          %v343 = vpow.pop %v342
          %v344 = vmul.f32 %v341, 1.442695
          %v345 = vpow.pop %v344
          %v346 = vmul.f32 %v318, %v343
          %v347 = vmul.f32 %v319, %v345
          %v348 = vadd.f32 %v308, %v346
          %v349 = vadd.f32 %v309, %v347
          %v350 = vadd.f32 %v310, %v343
          %v351 = vadd.f32 %v311, %v345
          %352 = vrot.lane.b32.xlu0 %v178, 127
          %v353 = vpop.permute.xlu0 %352
          %354 = vrot.lane.b32.xlu0 %v179, 127
          %v355 = vpop.permute.xlu0 %354
          %v356 = vsel %vm271, %v353, %v355
          %v357 = vsel %vm271, %v355, %v353
          %v358 = vsel %vm276, %v356, %v178
          %v359 = vsel %vm277, %v357, %v179
          %v360 = vsub.f32 %v178, %v358
          %v361 = vsub.f32 %v179, %v359
          %v362 = vand.u32 2147483647, %v360
          %v363 = vand.u32 2147483647, %v361
          %v364 = vsel %vm210, %v362, 0.0
          %v365 = vrot.slane %v364, 4
          %v366 = vadd.f32 %v364, %v365
          %v367 = vrot.slane %v366, 2
          %v368 = vadd.f32 %v366, %v367
          %v369 = vrot.slane %v368, 1
          %v370 = vadd.f32 %v368, %v369
          %v371 = vsel %vm210, %v363, 0.0
          %v372 = vrot.slane %v371, 4
          %v373 = vadd.f32 %v371, %v372
          %v374 = vrot.slane %v373, 2
          %v375 = vadd.f32 %v373, %v374
          %v376 = vrot.slane %v375, 1
          %v377 = vadd.f32 %v375, %v376
          %v378 = vmul.f32 %v370, 0.25
          %v379 = vmul.f32 %v377, 0.25
          %v380 = vsub.f32 0.0, %v378
          %v381 = vsub.f32 0.0, %v379
          %v382 = vmul.f32 %v380, 1.442695
          %v383 = vpow.pop %v382
          %v384 = vmul.f32 %v381, 1.442695
          %v385 = vpow.pop %v384
          %v386 = vmul.f32 %v358, %v383
          %v387 = vmul.f32 %v359, %v385
          %v388 = vadd.f32 %v348, %v386
          %v389 = vadd.f32 %v349, %v387
          %v390 = vadd.f32 %v350, %v383
          %v391 = vadd.f32 %v351, %v385
          %392 = vrot.lane.b32.xlu0 %v178, 112
          %v393 = vpop.permute.xlu0 %392
          %394 = vrot.lane.b32.xlu0 %v179, 112
          %v395 = vpop.permute.xlu0 %394
          %vm396 = vcmp.lt.s32.totalorder %v134, 112
          %v397 = vsel %vm396, %v393, %v395
          %v398 = vsel %vm396, %v395, %v393
          %v399 = vsel %vm160, 1, 0
          %v400 = vsel %vm161, 1, 0
          %vm401 = vcmp.eq.s32.totalorder %v399, 1
          %vm402 = vcmp.eq.s32.totalorder %v400, 1
          %v403 = vsel %vm401, %v397, %v178
          %v404 = vsel %vm402, %v398, %v179
          %405 = vrot.lane.b32.xlu0 %v403, 1
          %v406 = vpop.permute.xlu0 %405
          %407 = vrot.lane.b32.xlu0 %v404, 1
          %v408 = vpop.permute.xlu0 %407
          %v409 = vsel %vm197, %v406, %v408
          %v410 = vsel %vm197, %v408, %v406
          %v411 = vsel %vm202, %v410, %v403
          %v412 = vsel %vm203, %v409, %v404
          %v413 = vsub.f32 %v178, %v411
          %v414 = vsub.f32 %v179, %v412
          %v415 = vand.u32 2147483647, %v413
          %v416 = vand.u32 2147483647, %v414
          %v417 = vsel %vm210, %v415, 0.0
          %v418 = vrot.slane %v417, 4
          %v419 = vadd.f32 %v417, %v418
          %v420 = vrot.slane %v419, 2
          %v421 = vadd.f32 %v419, %v420
          %v422 = vrot.slane %v421, 1
          %v423 = vadd.f32 %v421, %v422
          %v424 = vsel %vm210, %v416, 0.0
          %v425 = vrot.slane %v424, 4
          %v426 = vadd.f32 %v424, %v425
          %v427 = vrot.slane %v426, 2
          %v428 = vadd.f32 %v426, %v427
          %v429 = vrot.slane %v428, 1
          %v430 = vadd.f32 %v428, %v429
          %v431 = vmul.f32 %v423, 0.25
          %v432 = vmul.f32 %v430, 0.25
          %v433 = vsub.f32 0.0, %v431
          %v434 = vsub.f32 0.0, %v432
          %v435 = vmul.f32 %v433, 1.442695
          %v436 = vpow.pop %v435
          %v437 = vmul.f32 %v434, 1.442695
          %v438 = vpow.pop %v437
          %v439 = vmul.f32 %v411, %v436
          %v440 = vmul.f32 %v412, %v438
          %v441 = vadd.f32 %v388, %v439
          %v442 = vadd.f32 %v389, %v440
          %v443 = vadd.f32 %v390, %v436
          %v444 = vadd.f32 %v391, %v438
          %v445 = vsub.f32 %v178, %v403
          %v446 = vsub.f32 %v179, %v404
          %v447 = vand.u32 2147483647, %v445
          %v448 = vand.u32 2147483647, %v446
          %v449 = vsel %vm210, %v447, 0.0
          %v450 = vrot.slane %v449, 4
          %v451 = vadd.f32 %v449, %v450
          %v452 = vrot.slane %v451, 2
          %v453 = vadd.f32 %v451, %v452
          %v454 = vrot.slane %v453, 1
          %v455 = vadd.f32 %v453, %v454
          %v456 = vsel %vm210, %v448, 0.0
          %v457 = vrot.slane %v456, 4
          %v458 = vadd.f32 %v456, %v457
          %v459 = vrot.slane %v458, 2
          %v460 = vadd.f32 %v458, %v459
          %v461 = vrot.slane %v460, 1
          %v462 = vadd.f32 %v460, %v461
          %v463 = vmul.f32 %v455, 0.25
          %v464 = vmul.f32 %v462, 0.25
          %v465 = vsub.f32 0.0, %v463
          %v466 = vsub.f32 0.0, %v464
          %v467 = vmul.f32 %v465, 1.442695
          %v468 = vpow.pop %v467
          %v469 = vmul.f32 %v466, 1.442695
          %v470 = vpow.pop %v469
          %v471 = vmul.f32 %v403, %v468
          %v472 = vmul.f32 %v404, %v470
          %v473 = vadd.f32 %v441, %v471
          %v474 = vadd.f32 %v442, %v472
          %v475 = vadd.f32 %v443, %v468
          %v476 = vadd.f32 %v444, %v470
          %477 = vrot.lane.b32.xlu0 %v403, 127
          %v478 = vpop.permute.xlu0 %477
          %479 = vrot.lane.b32.xlu0 %v404, 127
          %v480 = vpop.permute.xlu0 %479
          %v481 = vsel %vm271, %v478, %v480
          %v482 = vsel %vm271, %v480, %v478
          %v483 = vsel %vm276, %v481, %v403
          %v484 = vsel %vm277, %v482, %v404
          %v485 = vsub.f32 %v178, %v483
          %v486 = vsub.f32 %v179, %v484
          %v487 = vand.u32 2147483647, %v485
          %v488 = vand.u32 2147483647, %v486
          %v489 = vsel %vm210, %v487, 0.0
          %v490 = vrot.slane %v489, 4
          %v491 = vadd.f32 %v489, %v490
          %v492 = vrot.slane %v491, 2
          %v493 = vadd.f32 %v491, %v492
          %v494 = vrot.slane %v493, 1
          %v495 = vadd.f32 %v493, %v494
          %v496 = vsel %vm210, %v488, 0.0
          %v497 = vrot.slane %v496, 4
          %v498 = vadd.f32 %v496, %v497
          %v499 = vrot.slane %v498, 2
          %v500 = vadd.f32 %v498, %v499
          %v501 = vrot.slane %v500, 1
          %v502 = vadd.f32 %v500, %v501
          %v503 = vmul.f32 %v495, 0.25
          %v504 = vmul.f32 %v502, 0.25
          %v505 = vsub.f32 0.0, %v503
          %v506 = vsub.f32 0.0, %v504
          %v507 = vmul.f32 %v505, 1.442695
          %v508 = vpow.pop %v507
          %v509 = vmul.f32 %v506, 1.442695
          %v510 = vpow.pop %v509
          %v511 = vmul.f32 %v483, %v508
          %v512 = vmul.f32 %v484, %v510
          %v513 = vadd.f32 %v473, %v511
          %v514 = vadd.f32 %v474, %v512
          %v515 = vadd.f32 %v475, %v508
          %v516 = vadd.f32 %v476, %v510
          %v517 = vrcp.pop %v515
          %v518 = vrcp.pop %v516
          %v519 = vmul.f32 %v513, %v517
          %v520 = vmul.f32 %v514, %v518
        $region33: #{tpu_custom_call.1} parent=23 // loop_footer
          %s177 = sadd.s32 1, %s173
        $region34: #{tpu_custom_call.1} parent=23 // loop_footer_branch
          %172 = sbr.rel target = $region30
        $region35: #{tpu_custom_call.1} parent=23 // loop_exit
          _
        %v523 = vcombine.low %v178, %v179
        %525 = vst [vmem:[%s132] sm:$0xff] %v523
        %s526 = sand.u32 %s52, 1
        %s527 = scalar_lea.sflag [#allocation4], %s526
        %s528 = sand.u32 %s52, 1
        %s529 = smul.addr %s528, 8
        %s530 = scalar_lea.vmem [#allocation5], %s529
        // Predicated region
        $region36: #{tpu_custom_call.1} parent=23 // pred_check
          %p531 = pneg %p62
        $region37: #{tpu_custom_call.1} parent=23 // pred_check_branch
          %533 = sbr.rel (%p531) target = $region39
        $region38: #{tpu_custom_call.1} parent=23 // pred_region
          %s535 = ssub.s32 128, 128
          %536 = vsyncadd %s527, %s535
          %s537 = smul.addr %s18, 2
          %s538 = smul.addr %s537, 64
          %s539 = scalar_lea.hbm %s1, %s538
          %s541 = sshll.u32 %s530, 4
          %s542 = int_to_ptr.vmem [resolvable:$true] %s541
          %544 = dma.vmem_to_hbm [thread:$0]  %s542, 128, %s539, %s527
        $region39: #{tpu_custom_call.1} parent=23 // pred_fallthru
          _
      $region24: #{tpu_custom_call.1} parent=5 // pred_fallthru
        _
      %p545 = scmp.le.s32.totalorder 2, %s13
      // Predicated region
      $region40: #{tpu_custom_call.1} parent=5 // pred_check
        %p546 = pneg %p545
      $region41: #{tpu_custom_call.1} parent=5 // pred_check_branch
        %548 = sbr.rel (%p546) target = $region43
      $region42: #{tpu_custom_call.1} parent=5 // pred_region
        %s549 = ssub.s32 %s13, 2
        // Predicated region
        $region44: #{tpu_custom_call.1} parent=42 // pred_check
          %p550 = pneg %p68
        $region45: #{tpu_custom_call.1} parent=42 // pred_check_branch
          %552 = sbr.rel (%p550) target = $region47
        $region46: #{tpu_custom_call.1} parent=42 // pred_region
          %s553 = sand.u32 %s53, 1
          %s554 = scalar_lea.sflag [#allocation4], %s553
          %s555 = sand.u32 %s53, 1
          %s556 = smul.addr %s555, 8
          %s557 = scalar_lea.vmem [#allocation5], %s556
          %558 = dma.done %s554, 128
        $region47: #{tpu_custom_call.1} parent=42 // pred_fallthru
          _
      $region43: #{tpu_custom_call.1} parent=5 // pred_fallthru
        _
    $region6: #{tpu_custom_call.1} parent=1 // loop_footer
      %s17 = sadd.s32 1, %s13
    $region7: #{tpu_custom_call.1} parent=1 // loop_footer_branch
      %12 = sbr.rel target = $region3
    $region8: #{tpu_custom_call.1} parent=1 // loop_exit
      _
    %559 = vsyncpa [#allocation3], 1
    %s560 = scalar_lea.sflag [#allocation3], 1
    %561 = vsyncpa %s560, 1
    %562 = vsyncpa [#allocation4], 1
    %s563 = scalar_lea.sflag [#allocation4], 1
    %564 = vsyncpa %s563, 1

</llo_original>
